<compile_context>
chip_gen: v7x
topology: tpu7x:2x2x1
jax: 0.10.0
libtpu: 0.0.40
codegen_flags: <defaults>
</compile_context>

<pallas_src>
import jax
import jax.numpy as jnp
from jax.experimental import pallas as pl
from jax.experimental.pallas import tpu as pltpu

HIDDEN = 10
IN_DIM = 1
OUT_DIM = 1

H_PAD = 16          # hidden padded to a multiple of 8 sublanes (NOT to 128 lanes)
LANE = 128          # batch tile granularity (lane width)
MAX_TILE_B = 8192   # ~2.5 MiB of live f32 temporaries at this tile -> fits the
                    # scoped-VMEM defaults on v5e/v6e/v7x with room to spare


def _round_up(v, m):
    return ((v + m - 1) // m) * m


def _choose_tiling(n):
    """Pick (tile_b, padded_n): tile_b multiple of 128, minimal batch padding."""
    nb128 = _round_up(max(n, 1), LANE)
    num_blocks = -(-nb128 // MAX_TILE_B)
    tile_b = _round_up(-(-nb128 // num_blocks), LANE)
    return tile_b, tile_b * num_blocks


def _tan(z):
    # torch.tan_ is trigonometric tan; sin/cos lower natively in Mosaic.
    return jnp.sin(z) / jnp.cos(z)


def mlp_kernel(x_ref, w1_ref, w2_ref, b2_ref, w3_ref, b3_ref, o_ref):
    x = x_ref[...]                                       # (1, TB)  batch on lanes
    # fc1 (bias-free, in_dim = 1): outer product on the VPU, no MXU weight push.
    h1 = w1_ref[...] * x                                 # (16,1)*(1,TB) -> (16,TB)
    # fc2 + tan: one small MXU matmul, hidden stays on sublanes.
    z2 = jnp.dot(w2_ref[...], h1,
                 preferred_element_type=jnp.float32) + b2_ref[...]   # (16, TB)
    h2 = _tan(z2)
    # fc3 + tan: weighted sublane reduce (XLU) + bias; padded sublanes are zero.
    z3 = jnp.sum(h2 * w3_ref[...], axis=0, keepdims=True) + b3_ref[...]  # (1, TB)
    o_ref[...] = _tan(z3)                                # lane-dense (1, TB) store


def pack_params(w1, w2, b2, w3, b3):
    """Pad + transpose + pack parameters ONCE (hoisted out of the forward path).

    Weights use the (in, out) convention (== torch Linear `.weight.T`)."""
    w1c = jnp.zeros((H_PAD, 1), jnp.float32).at[:HIDDEN, 0].set(w1[0, :])
    w2t = jnp.zeros((H_PAD, H_PAD), jnp.float32).at[:HIDDEN, :HIDDEN].set(w2.T)
    b2c = jnp.zeros((H_PAD, 1), jnp.float32).at[:HIDDEN, 0].set(b2)
    w3c = jnp.zeros((H_PAD, 1), jnp.float32).at[:HIDDEN, 0].set(w3[:, 0])
    b3m = jnp.asarray(b3, jnp.float32).reshape(1, 1)
    return w1c, w2t, b2c, w3c, b3m


@jax.jit
def net_forward(x, w1c, w2t, b2c, w3c, b3m):
    """x: (N, 1) f32 -> (N, 1) f32."""
    n = x.shape[0]
    tile_b, nb = _choose_tiling(n)

    # Transposed input row ((N,1)->(1,N) is a free reshape); pad only the batch
    # remainder to a multiple of tile_b -- no feature-lane padding in HBM.
    x_row = jnp.zeros((1, nb), jnp.float32).at[:, :n].set(
        x.reshape(1, n).astype(jnp.float32))

    out = pl.pallas_call(
        mlp_kernel,
        out_shape=jax.ShapeDtypeStruct((1, nb), jnp.float32),
        grid=(nb // tile_b,),
        in_specs=[
            pl.BlockSpec((1, tile_b), lambda i: (0, i)),      # streamed x row
            pl.BlockSpec((H_PAD, 1), lambda i: (0, 0)),       # w1 column  (VMEM-resident)
            pl.BlockSpec((H_PAD, H_PAD), lambda i: (0, 0)),   # w2^T       (VMEM-resident)
            pl.BlockSpec((H_PAD, 1), lambda i: (0, 0)),       # b2 column  (VMEM-resident)
            pl.BlockSpec((H_PAD, 1), lambda i: (0, 0)),       # w3 column  (VMEM-resident)
            pl.BlockSpec((1, 1), lambda i: (0, 0)),           # b3 scalar  (VMEM-resident)
        ],
        out_specs=pl.BlockSpec((1, tile_b), lambda i: (0, i)),  # lane-dense output
        compiler_params=pltpu.CompilerParams(
            dimension_semantics=("parallel",),        # independent batch blocks
            vmem_limit_bytes=32 * 1024 * 1024,        # explicit, safe on v5e/v6e/v7x
        ),
    )(x_row, w1c, w2t, b2c, w3c, b3m)

    # Fused under jit; returns the PyTorch-shaped (N, 1) result.
    return out[0, :n].reshape(n, OUT_DIM)


def reference_forward(x, w1, w2, b2, w3, b3):
    hp = jax.lax.Precision.HIGHEST
    h1 = jnp.dot(x, w1, precision=hp)
    h2 = jnp.tan(jnp.dot(h1, w2, precision=hp) + b2)
    return jnp.tan(jnp.dot(h2, w3, precision=hp) + b3)


if __name__ == "__main__":
    key = jax.random.PRNGKey(0)
    k_x, k_w1, k_w2, k_b2, k_w3, k_b3 = jax.random.split(key, 6)

    # Weight scales chosen so pre-activations stay far from tan() poles
    # (|z| << pi/2): keeps the 1e-5 comparison well-conditioned.
    w1 = 0.2 * jax.random.normal(k_w1, (IN_DIM, HIDDEN), dtype=jnp.float32)
    w2 = 0.1 * jax.random.normal(k_w2, (HIDDEN, HIDDEN), dtype=jnp.float32)
    b2 = 0.05 * jax.random.normal(k_b2, (HIDDEN,), dtype=jnp.float32)
    w3 = 0.1 * jax.random.normal(k_w3, (HIDDEN, OUT_DIM), dtype=jnp.float32)
    b3 = 0.05 * jax.random.normal(k_b3, (OUT_DIM,), dtype=jnp.float32)

    # Parameter padding/packing hoisted out of the forward path (done once).
    params = jax.block_until_ready(pack_params(w1, w2, b2, w3, b3))

    for N in (3, 200):   # exercises batch padding (N < 128 and 128 < N < 256)
        x = jax.random.normal(jax.random.fold_in(k_x, N), (N, IN_DIM),
                              dtype=jnp.float32)
        y = net_forward(x, *params)
        jax.block_until_ready(y)

        y_ref = reference_forward(x, w1, w2, b2, w3, b3)
        assert y.shape == (N, OUT_DIM)
        max_err = jnp.max(jnp.abs(y - y_ref))
        assert jnp.allclose(y, y_ref, atol=1e-5, rtol=1e-4), (
            f"mismatch vs reference at N={N} (max abs err {max_err})")

    print("KERNEL_OK")
</pallas_src>

<mosaic_0001>
module attributes {stable_mosaic.version = 11 : i64} {
  func.func @mlp_kernel(%arg0: i32, %arg1: memref<1x128xf32, #tpu.memory_space<vmem>>, %arg2: memref<16x1xf32, #tpu.memory_space<vmem>>, %arg3: memref<16x16xf32, #tpu.memory_space<vmem>>, %arg4: memref<16x1xf32, #tpu.memory_space<vmem>>, %arg5: memref<16x1xf32, #tpu.memory_space<vmem>>, %arg6: memref<1x1xf32, #tpu.memory_space<vmem>>, %arg7: memref<1x128xf32, #tpu.memory_space<vmem>>) attributes {dimension_semantics = [#tpu.dimension_semantics<parallel>], iteration_bounds = array<i64: 1>, scalar_prefetch = 0 : i64, scratch_operands = 0 : i64, tpu.core_type = #tpu.core_type<tc>, window_params = [{transform_indices = @transform_0, window_bounds = array<i64: 1, 128>}, {pipeline_mode = #tpu.pipeline_mode<synchronous>, transform_indices = @transform_1, window_bounds = array<i64: 16, 1>}, {pipeline_mode = #tpu.pipeline_mode<synchronous>, transform_indices = @transform_2, window_bounds = array<i64: 16, 16>}, {pipeline_mode = #tpu.pipeline_mode<synchronous>, transform_indices = @transform_3, window_bounds = array<i64: 16, 1>}, {pipeline_mode = #tpu.pipeline_mode<synchronous>, transform_indices = @transform_4, window_bounds = array<i64: 16, 1>}, {pipeline_mode = #tpu.pipeline_mode<synchronous>, transform_indices = @transform_5, window_bounds = array<i64: 1, 1>}, {transform_indices = @transform_6, window_bounds = array<i64: 1, 128>}]} {
    %c0 = arith.constant 0 : index
    %c0_0 = arith.constant 0 : index
    %0 = vector.load %arg1[%c0, %c0_0] : memref<1x128xf32, #tpu.memory_space<vmem>>, vector<1x128xf32>
    %c0_1 = arith.constant 0 : index
    %c0_2 = arith.constant 0 : index
    %1 = vector.load %arg2[%c0_1, %c0_2] : memref<16x1xf32, #tpu.memory_space<vmem>>, vector<16x1xf32>
    %2 = vector.broadcast %1 : vector<16x1xf32> to vector<16x128xf32>
    %3 = vector.broadcast %0 : vector<1x128xf32> to vector<16x128xf32>
    %4 = arith.mulf %2, %3 : vector<16x128xf32>
    %c0_3 = arith.constant 0 : index
    %c0_4 = arith.constant 0 : index
    %5 = vector.load %arg3[%c0_3, %c0_4] : memref<16x16xf32, #tpu.memory_space<vmem>>, vector<16x16xf32>
    %cst = arith.constant dense<0.000000e+00> : vector<16x128xf32>
    %6 = tpu.matmul %5, %4, %cst {dimension_numbers = #tpu.dot_dimension_numbers<[1], [0], [0], [1], [0, 0, 1, 1], [], []>} : vector<16x16xf32>, vector<16x128xf32>, vector<16x128xf32> -> vector<16x128xf32>
    %c0_5 = arith.constant 0 : index
    %c0_6 = arith.constant 0 : index
    %7 = vector.load %arg4[%c0_5, %c0_6] : memref<16x1xf32, #tpu.memory_space<vmem>>, vector<16x1xf32>
    %8 = vector.broadcast %7 : vector<16x1xf32> to vector<16x128xf32>
    %9 = arith.addf %6, %8 : vector<16x128xf32>
    %10 = math.sin %9 : vector<16x128xf32>
    %11 = math.cos %9 : vector<16x128xf32>
    %12 = arith.divf %10, %11 : vector<16x128xf32>
    %c0_7 = arith.constant 0 : index
    %c0_8 = arith.constant 0 : index
    %13 = vector.load %arg5[%c0_7, %c0_8] : memref<16x1xf32, #tpu.memory_space<vmem>>, vector<16x1xf32>
    %14 = vector.broadcast %13 : vector<16x1xf32> to vector<16x128xf32>
    %15 = arith.mulf %12, %14 : vector<16x128xf32>
    %cst_9 = arith.constant dense<0.000000e+00> : vector<128xf32>
    %16 = vector.multi_reduction <add>, %15, %cst_9 [0] : vector<16x128xf32> to vector<128xf32>
    %17 = vector.shape_cast %16 : vector<128xf32> to vector<1x128xf32>
    %c0_10 = arith.constant 0 : index
    %c0_11 = arith.constant 0 : index
    %18 = vector.load %arg6[%c0_10, %c0_11] : memref<1x1xf32, #tpu.memory_space<vmem>>, vector<1x1xf32>
    %19 = vector.broadcast %18 : vector<1x1xf32> to vector<1x128xf32>
    %20 = arith.addf %17, %19 : vector<1x128xf32>
    %21 = math.sin %20 : vector<1x128xf32>
    %22 = math.cos %20 : vector<1x128xf32>
    %23 = arith.divf %21, %22 : vector<1x128xf32>
    %c0_12 = arith.constant 0 : index
    %c0_13 = arith.constant 0 : index
    %24 = vector.load %arg7[%c0_12, %c0_13] : memref<1x128xf32, #tpu.memory_space<vmem>>, vector<1x128xf32>
    tpu.vector_store %arg7[%c0_12, %c0_13], %23 {strides = array<i32>} : memref<1x128xf32, #tpu.memory_space<vmem>>, vector<1x128xf32>,
    return
  }
  func.func @transform_0(%arg0: i32) -> (i32, i32) {
    %c0_i32 = arith.constant 0 : i32
    %c0_i32_0 = arith.constant 0 : i32
    return %c0_i32, %arg0 : i32, i32
  }
  func.func @transform_1(%arg0: i32) -> (i32, i32) {
    %c0_i32 = arith.constant 0 : i32
    %c0_i32_0 = arith.constant 0 : i32
    %c0_i32_1 = arith.constant 0 : i32
    return %c0_i32, %c0_i32_0 : i32, i32
  }
  func.func @transform_2(%arg0: i32) -> (i32, i32) {
    %c0_i32 = arith.constant 0 : i32
    %c0_i32_0 = arith.constant 0 : i32
    %c0_i32_1 = arith.constant 0 : i32
    return %c0_i32, %c0_i32_0 : i32, i32
  }
  func.func @transform_3(%arg0: i32) -> (i32, i32) {
    %c0_i32 = arith.constant 0 : i32
    %c0_i32_0 = arith.constant 0 : i32
    %c0_i32_1 = arith.constant 0 : i32
    return %c0_i32, %c0_i32_0 : i32, i32
  }
  func.func @transform_4(%arg0: i32) -> (i32, i32) {
    %c0_i32 = arith.constant 0 : i32
    %c0_i32_0 = arith.constant 0 : i32
    %c0_i32_1 = arith.constant 0 : i32
    return %c0_i32, %c0_i32_0 : i32, i32
  }
  func.func @transform_5(%arg0: i32) -> (i32, i32) {
    %c0_i32 = arith.constant 0 : i32
    %c0_i32_0 = arith.constant 0 : i32
    %c0_i32_1 = arith.constant 0 : i32
    return %c0_i32, %c0_i32_0 : i32, i32
  }
  func.func @transform_6(%arg0: i32) -> (i32, i32) {
    %c0_i32 = arith.constant 0 : i32
    %c0_i32_0 = arith.constant 0 : i32
    return %c0_i32, %arg0 : i32, i32
  }
}

</mosaic_0001>

<llo_original>
// kernel: net_forward.1
$region0: #{net_forward.1}
  #allocation0 [shape = 'u32[]', space=smem, size = 0x4, offset = 0x4, fixed_abs, tag = 'smem constant byte address 0x4 - core index']
  #allocation1 [shape = 'u32[144,128]{1,0:T(1,128)}', space=vmem, size = 0x12000, scoped, tag = 'internal scratch']
  #allocation2 [shape = 'f32[1,1]{1,0:T(1,128)S(1)}', space=vmem, size = 0x200, scoped, tag = 'scoped memory for net_forward.1']
  %s0 = inlined_call_operand.vmem [shape: f32[1,128], index: 0, kind: input, shape index: {}]
  %s1 = inlined_call_operand.vmem [shape: f32[16,1], index: 1, kind: input, shape index: {}]
  %s2 = inlined_call_operand.vmem [shape: f32[16,16], index: 2, kind: input, shape index: {}]
  %s3 = inlined_call_operand.vmem [shape: f32[16,1], index: 3, kind: input, shape index: {}]
  %s4 = inlined_call_operand.vmem [shape: f32[16,1], index: 4, kind: input, shape index: {}]
  %s5 = inlined_call_operand.<no memory space> [shape: f32[1,1], index: 5, kind: input, shape index: {}]
  %s6 = inlined_call_operand.vmem [shape: f32[1,128], index: 6, kind: output, shape index: {}]
  %s7 = sld [smem:[#allocation0]]
  $region34: #{net_forward.1} parent=0
    _
  %s9 = ssub.s32 1, %s7
  %s10 = scalar_select 0, %s9, %s7
  %v11 = vstv %s5
  %12 = vst [vmem:[#allocation2] sm:$0x1] %v11
  // Predicated region
  $region2: #{net_forward.1} parent=0 // pred_check
    _
  $region3: #{net_forward.1} parent=0 // pred_check_branch
    %14 = sbr.rel (0) target = $region5
  $region4: #{net_forward.1} parent=0 // pred_region
    _
  $region5: #{net_forward.1} parent=0 // pred_fallthru
    _
  // Predicated region
  $region6: #{net_forward.1} parent=0 // pred_check
    _
  $region7: #{net_forward.1} parent=0 // pred_check_branch
    %16 = sbr.rel (0) target = $region9
  $region8: #{net_forward.1} parent=0 // pred_region
    _
  $region9: #{net_forward.1} parent=0 // pred_fallthru
    _
  // Predicated region
  $region10: #{net_forward.1} parent=0 // pred_check
    _
  $region11: #{net_forward.1} parent=0 // pred_check_branch
    %18 = sbr.rel (0) target = $region13
  $region12: #{net_forward.1} parent=0 // pred_region
    _
  $region13: #{net_forward.1} parent=0 // pred_fallthru
    _
  // Predicated region
  $region14: #{net_forward.1} parent=0 // pred_check
    _
  $region15: #{net_forward.1} parent=0 // pred_check_branch
    %20 = sbr.rel (0) target = $region17
  $region16: #{net_forward.1} parent=0 // pred_region
    _
  $region17: #{net_forward.1} parent=0 // pred_fallthru
    _
  // Predicated region
  $region18: #{net_forward.1} parent=0 // pred_check
    _
  $region19: #{net_forward.1} parent=0 // pred_check_branch
    %22 = sbr.rel (0) target = $region21
  $region20: #{net_forward.1} parent=0 // pred_region
    _
  $region21: #{net_forward.1} parent=0 // pred_fallthru
    _
  // Predicated region
  $region22: #{net_forward.1} parent=0 // pred_check
    _
  $region23: #{net_forward.1} parent=0 // pred_check_branch
    %24 = sbr.rel (0) target = $region25
  $region24: #{net_forward.1} parent=0 // pred_region
    _
  $region25: #{net_forward.1} parent=0 // pred_fallthru
    _
  %v25 = vld [vmem:[%s0] sm:$0x1]
  %v26 = vld [vmem:[%s1] sm:$0xff]
  %v27 = vld [vmem:[%s1 + $0x8] sm:$0xff]
  %29 = vset.pattern.permute.xlu0 0
  %30 = vperm.xlu0 %29, %v26
  %v31 = vpop.permute.xlu0 %30
  %34 = vset.pattern.permute.xlu0 0
  %35 = vperm.xlu0 %34, %v27
  %v36 = vpop.permute.xlu0 %35
  %v39 = vlaneseq
  %v40 = vshrl.u32 %v39, 7
  %v41 = vsub.s32 0, %v40
  %v42 = vrot.slane %v25, %v41
  %v44 = vmul.f32 %v31, %v42
  %v45 = vmul.f32 %v36, %v42
  %v46 = vld [vmem:[%s2] sm:$0xff]
  %v47 = vld [vmem:[%s2 + $0x8] sm:$0xff]
  %v48 = vld [vmem:[%s3] sm:$0xff]
  %v49 = vld [vmem:[%s3 + $0x8] sm:$0xff]
  %51 = vset.pattern.permute.xlu0 0
  %52 = vperm.xlu0 %51, %v48
  %v53 = vpop.permute.xlu0 %52
  %56 = vset.pattern.permute.xlu0 0
  %57 = vperm.xlu0 %56, %v49
  %v58 = vpop.permute.xlu0 %57
  %vm60 = vcmask 130048
  %v62 = vsel %vm60, %v46, 0
  %v65 = vsel %vm60, %v47, 0
  %67 = vmatprep.subr.mxu0 0.0
  %68 = vmatpush1.msra.mxu0 %v44
  %69 = vmatprep.subr.mxu0 0.0
  %70 = vmatpush1.msra.mxu0 %v45
  %71 = vmatprep.subr.mxu0 0.0
  %72 = vmatpush1.msra.mxu0 0.0
  %73 = vmatprep.subr.mxu0 0.0
  %74 = vmatpush1.msra.mxu0 0.0
  %75 = vmatprep.subr.mxu0 0.0
  %76 = vmatpush1.msra.mxu0 0.0
  %77 = vmatprep.subr.mxu0 0.0
  %78 = vmatpush1.msra.mxu0 0.0
  %79 = vmatprep.subr.mxu0 0.0
  %80 = vmatpush1.msra.mxu0 0.0
  %81 = vmatprep.subr.mxu0 0.0
  %82 = vmatpush1.msra.mxu0 0.0
  %83 = vmatprep.subr.mxu0 0.0
  %84 = vmatpush1.msra.mxu0 0.0
  %85 = vmatprep.subr.mxu0 0.0
  %86 = vmatpush1.msra.mxu0 0.0
  %87 = vmatprep.subr.mxu0 0.0
  %88 = vmatpush1.msra.mxu0 0.0
  %89 = vmatprep.subr.mxu0 0.0
  %90 = vmatpush1.msra.mxu0 0.0
  %91 = vmatprep.subr.mxu0 0.0
  %92 = vmatpush1.msra.mxu0 0.0
  %93 = vmatprep.subr.mxu0 0.0
  %94 = vmatpush1.msra.mxu0 0.0
  %95 = vmatprep.subr.mxu0 0.0
  %96 = vmatpush1.msra.mxu0 0.0
  %97 = vmatprep.subr.mxu0 0.0
  %98 = vmatpush1.msra.mxu0 0.0
  %99 = vmatprep.subr.mxu0 0.0
  %100 = vmatpush1.msra.mxu0 0.0
  %101 = vmatprep.subr.mxu0 0.0
  %102 = vmatpush1.msra.mxu0 0.0
  %103 = vmatprep.subr.mxu0 0.0
  %104 = vmatpush1.msra.mxu0 0.0
  %105 = vmatprep.subr.mxu0 0.0
  %106 = vmatpush1.msra.mxu0 0.0
  %107 = vmatprep.subr.mxu0 0.0
  %108 = vmatpush1.msra.mxu0 0.0
  %109 = vmatprep.subr.mxu0 0.0
  %110 = vmatpush1.msra.mxu0 0.0
  %111 = vmatprep.subr.mxu0 0.0
  %112 = vmatpush1.msra.mxu0 0.0
  %113 = vmatprep.subr.mxu0 0.0
  %114 = vmatpush1.msra.mxu0 0.0
  %115 = vmatprep.subr.mxu0 0.0
  %116 = vmatpush1.msra.mxu0 0.0
  %117 = vmatprep.subr.mxu0 0.0
  %118 = vmatpush1.msra.mxu0 0.0
  %119 = vmatprep.subr.mxu0 0.0
  %120 = vmatpush1.msra.mxu0 0.0
  %121 = vmatprep.subr.mxu0 0.0
  %122 = vmatpush1.msra.mxu0 0.0
  %123 = vmatprep.subr.mxu0 0.0
  %124 = vmatpush1.msra.mxu0 0.0
  %125 = vmatprep.subr.mxu0 0.0
  %126 = vmatpush1.msra.mxu0 0.0
  %127 = vmatprep.subr.mxu0 0.0
  %128 = vmatpush1.msra.mxu0 0.0
  %129 = vmatprep.subr.mxu0 0.0
  %130 = vmatpush1.msra.mxu0 0.0
  %131 = vmatprep.mubr.f32.mxu0 0.0
  %132 = vmatmul.mubr.f32.gmra.mrb[0].mxu0 %v62
  %v133 = vpop.f32.mrb[0].mxu0
  %v134 = vadd.f32 %v53, %v133
  %v135 = vpop.f32.mrb[0].mxu0
  %136 = vmatprep.mubr.f32.mxu0 0.0
  %137 = vmatmul.mubr.f32.gmra.mrb[0].mxu0 %v65
  %v138 = vpop.f32.mrb[0].mxu0
  %v139 = vadd.f32 %v58, %v138
  %v140 = vpop.f32.mrb[0].mxu0
  %141 = vdwg.mxu0
  %v142 = vand.u32 2147483647, %v134
  %vm143 = vcmp.le.f32.partialorder %v142, 0.7853982
  %vm144 = vcmp.lt.s32.totalorder %v134, 0
  %v145 = vand.u32 %v134, 2139095040
  %v146 = vshrl.u32 %v145, 23
  %v147 = vsub.s32 %v146, 127
  %v148 = vand.u32 2147483647, %v134
  %v149 = vand.u32 %v148, 8388607
  %v150 = vor.u32 %v149, 8388608
  %v151 = vsub.s32 0, %v150
  %v152 = vadd.s32 %v147, 1
  %vm153 = vcmp.gt.s32.totalorder %v152, 0
  %v154 = vsel %vm153, %v152, 0
  %v155 = vshrl.u32 %v154, 5
  %v156 = vand.u32 %v154, 31
  %v157 = vsub.s32 32, %v156
  %v158 = vshrl.u32 683565275, %v157
  %v159 = vshll.u32 683565275, %v156
  %v160 = vshrl.u32 2475754826, %v157
  %v161 = vor.u32 %v159, %v160
  %v162 = vshll.u32 2475754826, %v156
  %v163 = vshrl.u32 2131351028, %v157
  %v164 = vor.u32 %v162, %v163
  %v165 = vshll.u32 2131351028, %v156
  %v166 = vshrl.u32 2102212464, %v157
  %v167 = vor.u32 %v165, %v166
  %v168 = vshll.u32 2102212464, %v156
  %v169 = vshrl.u32 920167782, %v157
  %v170 = vor.u32 %v168, %v169
  %v171 = vshll.u32 920167782, %v156
  %v172 = vshrl.u32 1326507024, %v157
  %v173 = vor.u32 %v171, %v172
  %vm174 = vcmp.lt.s32.totalorder %v155, 1
  %vm175 = vcmp.lt.s32.totalorder %v155, 2
  %vm176 = vcmp.lt.s32.totalorder %v155, 3
  %vm177 = vcmp.lt.s32.totalorder %v155, 4
  %v178 = vsel %vm174, %v158, %v161
  %v179 = vsel %vm177, %v167, 2102212464
  %v180 = vsel %vm176, %v164, %v179
  %v181 = vsel %vm175, %v178, %v180
  %v182 = vsel %vm174, %v161, %v164
  %v183 = vsel %vm177, %v170, 920167782
  %v184 = vsel %vm176, %v167, %v183
  %v185 = vsel %vm175, %v182, %v184
  %v186 = vsel %vm174, %v164, %v167
  %v187 = vsel %vm177, %v173, 1326507024
  %v188 = vsel %vm176, %v170, %v187
  %v189 = vsel %vm175, %v186, %v188
  %v190 = vshll.u32 %v150, 8
  %v191 = vmul.u32.u64.compose %v190, %v189
  %v192 = vextract.low.u32 %v191
  %v193 = vextract.high.u32 %v191
  %v194 = vmul.u32.u64.compose %v190, %v185
  %v195 = vextract.low.u32 %v194
  %v196 = vextract.high.u32 %v194
  %v197 = vmul.u32 %v190, %v181
  %v198 = vadd.s32 %v193, %v195
  %vm199 = vc.u32 %v193, %v195
  %v200 = vadd.s32 %v196, 1
  %v201 = vsel %vm199, %v200, %v196
  %v202 = vadd.s32 %v197, %v201
  %v203 = vadd.s32 %v202, 536870912
  %v204 = vshrl.u32 %v203, 30
  %v205 = vshll.u32 %v204, 30
  %v206 = vsub.s32 %v202, %v205
  %vm207 = vcmp.lt.s32.totalorder %v206, 0
  %v208 = vsub.s32 0, %v206
  %v209 = vsel %vm207, %v208, %v206
  %v210 = vclz %v209
  %v211 = vsub.s32 %v210, 2
  %vm212 = vcmp.gt.s32.totalorder 0, %v211
  %v213 = vsel %vm212, 0, %v211
  %v214 = vsub.s32 32, %v213
  %v215 = vshll.u32 %v206, %v213
  %v216 = vshrl.u32 %v198, %v214
  %v217 = vor.u32 %v215, %v216
  %v218 = vsub.s32 4294967266, %v213
  %v219 = vadd.s32 %v218, 127
  %v220 = vshll.u32 %v219, 23
  %v221 = vor.u32 4788187, %v220
  %v222 = vand.u32 2147483647, %v221
  %v224 = vcvt.s32.f32 %v217
  %v225 = vmul.f32 %v224, %v222
  %v226 = vxor.u32 %v225, 2147483648
  %v227 = vsel %vm144, %v226, %v225
  %v228 = vsub.s32 4, %v204
  %v229 = vsel %vm144, %v228, %v204
  %v230 = vsel %vm143, %v134, %v227
  %v231 = vsel %vm143, 0, %v229
  %v232 = vcosq.f32.pop %v230
  %v233 = vsinq.f32.pop %v230
  %vm234 = vweird.f32 %v134
  %v235 = vadd.s32 %v231, 3
  %v236 = vand.u32 %v235, 3
  %vm237 = vcmp.lt.s32.totalorder %v236, 2
  %vm238 = vcmp.eq.s32.totalorder %v236, 0
  %v239 = vxor.u32 %v233, 2147483648
  %v240 = vsel %vm238, %v232, %v239
  %vm241 = vcmp.eq.s32.totalorder %v236, 2
  %v242 = vxor.u32 %v232, 2147483648
  %v243 = vsel %vm241, %v242, %v233
  %v244 = vsel %vm237, %v240, %v243
  %v245 = vsel %vm234, nan, %v244
  %v246 = vand.u32 2147483647, %v139
  %vm247 = vcmp.le.f32.partialorder %v246, 0.7853982
  %vm248 = vcmp.lt.s32.totalorder %v139, 0
  %v249 = vand.u32 %v139, 2139095040
  %v250 = vshrl.u32 %v249, 23
  %v251 = vsub.s32 %v250, 127
  %v252 = vand.u32 2147483647, %v139
  %v253 = vand.u32 %v252, 8388607
  %v254 = vor.u32 %v253, 8388608
  %v255 = vsub.s32 0, %v254
  %v256 = vadd.s32 %v251, 1
  %vm257 = vcmp.gt.s32.totalorder %v256, 0
  %v258 = vsel %vm257, %v256, 0
  %v259 = vshrl.u32 %v258, 5
  %v260 = vand.u32 %v258, 31
  %v261 = vsub.s32 32, %v260
  %v262 = vshrl.u32 683565275, %v261
  %v263 = vshll.u32 683565275, %v260
  %v264 = vshrl.u32 2475754826, %v261
  %v265 = vor.u32 %v263, %v264
  %v266 = vshll.u32 2475754826, %v260
  %v267 = vshrl.u32 2131351028, %v261
  %v268 = vor.u32 %v266, %v267
  %v269 = vshll.u32 2131351028, %v260
  %v270 = vshrl.u32 2102212464, %v261
  %v271 = vor.u32 %v269, %v270
  %v272 = vshll.u32 2102212464, %v260
  %v273 = vshrl.u32 920167782, %v261
  %v274 = vor.u32 %v272, %v273
  %v275 = vshll.u32 920167782, %v260
  %v276 = vshrl.u32 1326507024, %v261
  %v277 = vor.u32 %v275, %v276
  %vm278 = vcmp.lt.s32.totalorder %v259, 1
  %vm279 = vcmp.lt.s32.totalorder %v259, 2
  %vm280 = vcmp.lt.s32.totalorder %v259, 3
  %vm281 = vcmp.lt.s32.totalorder %v259, 4
  %v282 = vsel %vm278, %v262, %v265
  %v283 = vsel %vm281, %v271, 2102212464
  %v284 = vsel %vm280, %v268, %v283
  %v285 = vsel %vm279, %v282, %v284
  %v286 = vsel %vm278, %v265, %v268
  %v287 = vsel %vm281, %v274, 920167782
  %v288 = vsel %vm280, %v271, %v287
  %v289 = vsel %vm279, %v286, %v288
  %v290 = vsel %vm278, %v268, %v271
  %v291 = vsel %vm281, %v277, 1326507024
  %v292 = vsel %vm280, %v274, %v291
  %v293 = vsel %vm279, %v290, %v292
  %v294 = vshll.u32 %v254, 8
  %v295 = vmul.u32.u64.compose %v294, %v293
  %v296 = vextract.low.u32 %v295
  %v297 = vextract.high.u32 %v295
  %v298 = vmul.u32.u64.compose %v294, %v289
  %v299 = vextract.low.u32 %v298
  %v300 = vextract.high.u32 %v298
  %v301 = vmul.u32 %v294, %v285
  %v302 = vadd.s32 %v297, %v299
  %vm303 = vc.u32 %v297, %v299
  %v304 = vadd.s32 %v300, 1
  %v305 = vsel %vm303, %v304, %v300
  %v306 = vadd.s32 %v301, %v305
  %v307 = vadd.s32 %v306, 536870912
  %v308 = vshrl.u32 %v307, 30
  %v309 = vshll.u32 %v308, 30
  %v310 = vsub.s32 %v306, %v309
  %vm311 = vcmp.lt.s32.totalorder %v310, 0
  %v312 = vsub.s32 0, %v310
  %v313 = vsel %vm311, %v312, %v310
  %v314 = vclz %v313
  %v315 = vsub.s32 %v314, 2
  %vm316 = vcmp.gt.s32.totalorder 0, %v315
  %v317 = vsel %vm316, 0, %v315
  %v318 = vsub.s32 32, %v317
  %v319 = vshll.u32 %v310, %v317
  %v320 = vshrl.u32 %v302, %v318
  %v321 = vor.u32 %v319, %v320
  %v322 = vsub.s32 4294967266, %v317
  %v323 = vadd.s32 %v322, 127
  %v324 = vshll.u32 %v323, 23
  %v325 = vor.u32 4788187, %v324
  %v326 = vand.u32 2147483647, %v325
  %v328 = vcvt.s32.f32 %v321
  %v329 = vmul.f32 %v328, %v326
  %v330 = vxor.u32 %v329, 2147483648
  %v331 = vsel %vm248, %v330, %v329
  %v332 = vsub.s32 4, %v308
  %v333 = vsel %vm248, %v332, %v308
  %v334 = vsel %vm247, %v139, %v331
  %v335 = vsel %vm247, 0, %v333
  %v336 = vcosq.f32.pop %v334
  %v337 = vsinq.f32.pop %v334
  %vm338 = vweird.f32 %v139
  %v339 = vadd.s32 %v335, 3
  %v340 = vand.u32 %v339, 3
  %vm341 = vcmp.lt.s32.totalorder %v340, 2
  %vm342 = vcmp.eq.s32.totalorder %v340, 0
  %v343 = vxor.u32 %v337, 2147483648
  %v344 = vsel %vm342, %v336, %v343
  %vm345 = vcmp.eq.s32.totalorder %v340, 2
  %v346 = vxor.u32 %v336, 2147483648
  %v347 = vsel %vm345, %v346, %v337
  %v348 = vsel %vm341, %v344, %v347
  %v349 = vsel %vm338, nan, %v348
  %v350 = vand.u32 2147483647, %v134
  %vm351 = vcmp.le.f32.partialorder %v350, 0.7853982
  %vm352 = vcmp.lt.s32.totalorder %v134, 0
  %v353 = vand.u32 %v134, 2139095040
  %v354 = vshrl.u32 %v353, 23
  %v355 = vsub.s32 %v354, 127
  %v356 = vand.u32 2147483647, %v134
  %v357 = vand.u32 %v356, 8388607
  %v358 = vor.u32 %v357, 8388608
  %v359 = vsub.s32 0, %v358
  %v360 = vadd.s32 %v355, 1
  %vm361 = vcmp.gt.s32.totalorder %v360, 0
  %v362 = vsel %vm361, %v360, 0
  %v363 = vshrl.u32 %v362, 5
  %v364 = vand.u32 %v362, 31
  %v365 = vsub.s32 32, %v364
  %v366 = vshrl.u32 683565275, %v365
  %v367 = vshll.u32 683565275, %v364
  %v368 = vshrl.u32 2475754826, %v365
  %v369 = vor.u32 %v367, %v368
  %v370 = vshll.u32 2475754826, %v364
  %v371 = vshrl.u32 2131351028, %v365
  %v372 = vor.u32 %v370, %v371
  %v373 = vshll.u32 2131351028, %v364
  %v374 = vshrl.u32 2102212464, %v365
  %v375 = vor.u32 %v373, %v374
  %v376 = vshll.u32 2102212464, %v364
  %v377 = vshrl.u32 920167782, %v365
  %v378 = vor.u32 %v376, %v377
  %v379 = vshll.u32 920167782, %v364
  %v380 = vshrl.u32 1326507024, %v365
  %v381 = vor.u32 %v379, %v380
  %vm382 = vcmp.lt.s32.totalorder %v363, 1
  %vm383 = vcmp.lt.s32.totalorder %v363, 2
  %vm384 = vcmp.lt.s32.totalorder %v363, 3
  %vm385 = vcmp.lt.s32.totalorder %v363, 4
  %v386 = vsel %vm382, %v366, %v369
  %v387 = vsel %vm385, %v375, 2102212464
  %v388 = vsel %vm384, %v372, %v387
  %v389 = vsel %vm383, %v386, %v388
  %v390 = vsel %vm382, %v369, %v372
  %v391 = vsel %vm385, %v378, 920167782
  %v392 = vsel %vm384, %v375, %v391
  %v393 = vsel %vm383, %v390, %v392
  %v394 = vsel %vm382, %v372, %v375
  %v395 = vsel %vm385, %v381, 1326507024
  %v396 = vsel %vm384, %v378, %v395
  %v397 = vsel %vm383, %v394, %v396
  %v398 = vshll.u32 %v358, 8
  %v399 = vmul.u32.u64.compose %v398, %v397
  %v400 = vextract.low.u32 %v399
  %v401 = vextract.high.u32 %v399
  %v402 = vmul.u32.u64.compose %v398, %v393
  %v403 = vextract.low.u32 %v402
  %v404 = vextract.high.u32 %v402
  %v405 = vmul.u32 %v398, %v389
  %v406 = vadd.s32 %v401, %v403
  %vm407 = vc.u32 %v401, %v403
  %v408 = vadd.s32 %v404, 1
  %v409 = vsel %vm407, %v408, %v404
  %v410 = vadd.s32 %v405, %v409
  %v411 = vadd.s32 %v410, 536870912
  %v412 = vshrl.u32 %v411, 30
  %v413 = vshll.u32 %v412, 30
  %v414 = vsub.s32 %v410, %v413
  %vm415 = vcmp.lt.s32.totalorder %v414, 0
  %v416 = vsub.s32 0, %v414
  %v417 = vsel %vm415, %v416, %v414
  %v418 = vclz %v417
  %v419 = vsub.s32 %v418, 2
  %vm420 = vcmp.gt.s32.totalorder 0, %v419
  %v421 = vsel %vm420, 0, %v419
  %v422 = vsub.s32 32, %v421
  %v423 = vshll.u32 %v414, %v421
  %v424 = vshrl.u32 %v406, %v422
  %v425 = vor.u32 %v423, %v424
  %v426 = vsub.s32 4294967266, %v421
  %v427 = vadd.s32 %v426, 127
  %v428 = vshll.u32 %v427, 23
  %v429 = vor.u32 4788187, %v428
  %v430 = vand.u32 2147483647, %v429
  %v432 = vcvt.s32.f32 %v425
  %v433 = vmul.f32 %v432, %v430
  %v434 = vxor.u32 %v433, 2147483648
  %v435 = vsel %vm352, %v434, %v433
  %v436 = vsub.s32 4, %v412
  %v437 = vsel %vm352, %v436, %v412
  %v438 = vsel %vm351, %v134, %v435
  %v439 = vsel %vm351, 0, %v437
  %v440 = vcosq.f32.pop %v438
  %v441 = vsinq.f32.pop %v438
  %vm442 = vweird.f32 %v134
  %v443 = vand.u32 %v439, 3
  %vm444 = vcmp.lt.s32.totalorder %v443, 2
  %vm445 = vcmp.eq.s32.totalorder %v443, 0
  %v446 = vxor.u32 %v441, 2147483648
  %v447 = vsel %vm445, %v440, %v446
  %vm448 = vcmp.eq.s32.totalorder %v443, 2
  %v449 = vxor.u32 %v440, 2147483648
  %v450 = vsel %vm448, %v449, %v441
  %v451 = vsel %vm444, %v447, %v450
  %v452 = vsel %vm442, nan, %v451
  %v453 = vand.u32 2147483647, %v139
  %vm454 = vcmp.le.f32.partialorder %v453, 0.7853982
  %vm455 = vcmp.lt.s32.totalorder %v139, 0
  %v456 = vand.u32 %v139, 2139095040
  %v457 = vshrl.u32 %v456, 23
  %v458 = vsub.s32 %v457, 127
  %v459 = vand.u32 2147483647, %v139
  %v460 = vand.u32 %v459, 8388607
  %v461 = vor.u32 %v460, 8388608
  %v462 = vsub.s32 0, %v461
  %v463 = vadd.s32 %v458, 1
  %vm464 = vcmp.gt.s32.totalorder %v463, 0
  %v465 = vsel %vm464, %v463, 0
  %v466 = vshrl.u32 %v465, 5
  %v467 = vand.u32 %v465, 31
  %v468 = vsub.s32 32, %v467
  %v469 = vshrl.u32 683565275, %v468
  %v470 = vshll.u32 683565275, %v467
  %v471 = vshrl.u32 2475754826, %v468
  %v472 = vor.u32 %v470, %v471
  %v473 = vshll.u32 2475754826, %v467
  %v474 = vshrl.u32 2131351028, %v468
  %v475 = vor.u32 %v473, %v474
  %v476 = vshll.u32 2131351028, %v467
  %v477 = vshrl.u32 2102212464, %v468
  %v478 = vor.u32 %v476, %v477
  %v479 = vshll.u32 2102212464, %v467
  %v480 = vshrl.u32 920167782, %v468
  %v481 = vor.u32 %v479, %v480
  %v482 = vshll.u32 920167782, %v467
  %v483 = vshrl.u32 1326507024, %v468
  %v484 = vor.u32 %v482, %v483
  %vm485 = vcmp.lt.s32.totalorder %v466, 1
  %vm486 = vcmp.lt.s32.totalorder %v466, 2
  %vm487 = vcmp.lt.s32.totalorder %v466, 3
  %vm488 = vcmp.lt.s32.totalorder %v466, 4
  %v489 = vsel %vm485, %v469, %v472
  %v490 = vsel %vm488, %v478, 2102212464
  %v491 = vsel %vm487, %v475, %v490
  %v492 = vsel %vm486, %v489, %v491
  %v493 = vsel %vm485, %v472, %v475
  %v494 = vsel %vm488, %v481, 920167782
  %v495 = vsel %vm487, %v478, %v494
  %v496 = vsel %vm486, %v493, %v495
  %v497 = vsel %vm485, %v475, %v478
  %v498 = vsel %vm488, %v484, 1326507024
  %v499 = vsel %vm487, %v481, %v498
  %v500 = vsel %vm486, %v497, %v499
  %v501 = vshll.u32 %v461, 8
  %v502 = vmul.u32.u64.compose %v501, %v500
  %v503 = vextract.low.u32 %v502
  %v504 = vextract.high.u32 %v502
  %v505 = vmul.u32.u64.compose %v501, %v496
  %v506 = vextract.low.u32 %v505
  %v507 = vextract.high.u32 %v505
  %v508 = vmul.u32 %v501, %v492
  %v509 = vadd.s32 %v504, %v506
  %vm510 = vc.u32 %v504, %v506
  %v511 = vadd.s32 %v507, 1
  %v512 = vsel %vm510, %v511, %v507
  %v513 = vadd.s32 %v508, %v512
  %v514 = vadd.s32 %v513, 536870912
  %v515 = vshrl.u32 %v514, 30
  %v516 = vshll.u32 %v515, 30
  %v517 = vsub.s32 %v513, %v516
  %vm518 = vcmp.lt.s32.totalorder %v517, 0
  %v519 = vsub.s32 0, %v517
  %v520 = vsel %vm518, %v519, %v517
  %v521 = vclz %v520
  %v522 = vsub.s32 %v521, 2
  %vm523 = vcmp.gt.s32.totalorder 0, %v522
  %v524 = vsel %vm523, 0, %v522
  %v525 = vsub.s32 32, %v524
  %v526 = vshll.u32 %v517, %v524
  %v527 = vshrl.u32 %v509, %v525
  %v528 = vor.u32 %v526, %v527
  %v529 = vsub.s32 4294967266, %v524
  %v530 = vadd.s32 %v529, 127
  %v531 = vshll.u32 %v530, 23
  %v532 = vor.u32 4788187, %v531
  %v533 = vand.u32 2147483647, %v532
  %v535 = vcvt.s32.f32 %v528
  %v536 = vmul.f32 %v535, %v533
  %v537 = vxor.u32 %v536, 2147483648
  %v538 = vsel %vm455, %v537, %v536
  %v539 = vsub.s32 4, %v515
  %v540 = vsel %vm455, %v539, %v515
  %v541 = vsel %vm454, %v139, %v538
  %v542 = vsel %vm454, 0, %v540
  %v543 = vcosq.f32.pop %v541
  %v544 = vsinq.f32.pop %v541
  %vm545 = vweird.f32 %v139
  %v546 = vand.u32 %v542, 3
  %vm547 = vcmp.lt.s32.totalorder %v546, 2
  %vm548 = vcmp.eq.s32.totalorder %v546, 0
  %v549 = vxor.u32 %v544, 2147483648
  %v550 = vsel %vm548, %v543, %v549
  %vm551 = vcmp.eq.s32.totalorder %v546, 2
  %v552 = vxor.u32 %v543, 2147483648
  %v553 = vsel %vm551, %v552, %v544
  %v554 = vsel %vm547, %v550, %v553
  %v555 = vsel %vm545, nan, %v554
  %v556 = vrcp.pop %v452
  %v557 = vmul.f32 %v245, %v556
  %v558 = vrcp.pop %v555
  %v559 = vmul.f32 %v349, %v558
  %v560 = vld [vmem:[%s4] sm:$0xff]
  %v561 = vld [vmem:[%s4 + $0x8] sm:$0xff]
  %563 = vset.pattern.permute.xlu0 0
  %564 = vperm.xlu0 %563, %v560
  %v565 = vpop.permute.xlu0 %564
  %568 = vset.pattern.permute.xlu0 0
  %569 = vperm.xlu0 %568, %v561
  %v570 = vpop.permute.xlu0 %569
  %v572 = vmul.f32 %v557, %v565
  %v573 = vmul.f32 %v559, %v570
  %v574 = vadd.f32 %v572, %v573
  %v575 = vrot.slane %v574, 4
  %v576 = vadd.f32 %v574, %v575
  %v577 = vrot.slane %v576, 2
  %v578 = vadd.f32 %v576, %v577
  %v579 = vrot.slane %v578, 1
  %v580 = vadd.f32 %v578, %v579
  %v581 = vld [vmem:[#allocation2] sm:$0x1]
  %583 = vset.pattern.permute.xlu0 0
  %584 = vperm.xlu0 %583, %v581
  %v585 = vpop.permute.xlu0 %584
  %v587 = vlaneseq
  %v588 = vshrl.u32 %v587, 7
  %v589 = vsub.s32 0, %v588
  %v590 = vrot.slane %v585, %v589
  %v591 = vadd.f32 %v580, %v590
  %v592 = vand.u32 2147483647, %v591
  %vm593 = vcmp.le.f32.partialorder %v592, 0.7853982
  %vm594 = vcmp.lt.s32.totalorder %v591, 0
  %v595 = vand.u32 %v591, 2139095040
  %v596 = vshrl.u32 %v595, 23
  %v597 = vsub.s32 %v596, 127
  %v598 = vand.u32 2147483647, %v591
  %v599 = vand.u32 %v598, 8388607
  %v600 = vor.u32 %v599, 8388608
  %v601 = vsub.s32 0, %v600
  %v602 = vadd.s32 %v597, 1
  %vm603 = vcmp.gt.s32.totalorder %v602, 0
  %v604 = vsel %vm603, %v602, 0
  %v605 = vshrl.u32 %v604, 5
  %v606 = vand.u32 %v604, 31
  %v607 = vsub.s32 32, %v606
  %v608 = vshrl.u32 683565275, %v607
  %v609 = vshll.u32 683565275, %v606
  %v610 = vshrl.u32 2475754826, %v607
  %v611 = vor.u32 %v609, %v610
  %v612 = vshll.u32 2475754826, %v606
  %v613 = vshrl.u32 2131351028, %v607
  %v614 = vor.u32 %v612, %v613
  %v615 = vshll.u32 2131351028, %v606
  %v616 = vshrl.u32 2102212464, %v607
  %v617 = vor.u32 %v615, %v616
  %v618 = vshll.u32 2102212464, %v606
  %v619 = vshrl.u32 920167782, %v607
  %v620 = vor.u32 %v618, %v619
  %v621 = vshll.u32 920167782, %v606
  %v622 = vshrl.u32 1326507024, %v607
  %v623 = vor.u32 %v621, %v622
  %vm624 = vcmp.lt.s32.totalorder %v605, 1
  %vm625 = vcmp.lt.s32.totalorder %v605, 2
  %vm626 = vcmp.lt.s32.totalorder %v605, 3
  %vm627 = vcmp.lt.s32.totalorder %v605, 4
  %v628 = vsel %vm624, %v608, %v611
  %v629 = vsel %vm627, %v617, 2102212464
  %v630 = vsel %vm626, %v614, %v629
  %v631 = vsel %vm625, %v628, %v630
  %v632 = vsel %vm624, %v611, %v614
  %v633 = vsel %vm627, %v620, 920167782
  %v634 = vsel %vm626, %v617, %v633
  %v635 = vsel %vm625, %v632, %v634
  %v636 = vsel %vm624, %v614, %v617
  %v637 = vsel %vm627, %v623, 1326507024
  %v638 = vsel %vm626, %v620, %v637
  %v639 = vsel %vm625, %v636, %v638
  %v640 = vshll.u32 %v600, 8
  %v641 = vmul.u32.u64.compose %v640, %v639
  %v642 = vextract.low.u32 %v641
  %v643 = vextract.high.u32 %v641
  %v644 = vmul.u32.u64.compose %v640, %v635
  %v645 = vextract.low.u32 %v644
  %v646 = vextract.high.u32 %v644
  %v647 = vmul.u32 %v640, %v631
  %v648 = vadd.s32 %v643, %v645
  %vm649 = vc.u32 %v643, %v645
  %v650 = vadd.s32 %v646, 1
  %v651 = vsel %vm649, %v650, %v646
  %v652 = vadd.s32 %v647, %v651
  %v653 = vadd.s32 %v652, 536870912
  %v654 = vshrl.u32 %v653, 30
  %v655 = vshll.u32 %v654, 30
  %v656 = vsub.s32 %v652, %v655
  %vm657 = vcmp.lt.s32.totalorder %v656, 0
  %v658 = vsub.s32 0, %v656
  %v659 = vsel %vm657, %v658, %v656
  %v660 = vclz %v659
  %v661 = vsub.s32 %v660, 2
  %vm662 = vcmp.gt.s32.totalorder 0, %v661
  %v663 = vsel %vm662, 0, %v661
  %v664 = vsub.s32 32, %v663
  %v665 = vshll.u32 %v656, %v663
  %v666 = vshrl.u32 %v648, %v664
  %v667 = vor.u32 %v665, %v666
  %v668 = vsub.s32 4294967266, %v663
  %v669 = vadd.s32 %v668, 127
  %v670 = vshll.u32 %v669, 23
  %v671 = vor.u32 4788187, %v670
  %v672 = vand.u32 2147483647, %v671
  %v674 = vcvt.s32.f32 %v667
  %v675 = vmul.f32 %v674, %v672
  %v676 = vxor.u32 %v675, 2147483648
  %v677 = vsel %vm594, %v676, %v675
  %v678 = vsub.s32 4, %v654
  %v679 = vsel %vm594, %v678, %v654
  %v680 = vsel %vm593, %v591, %v677
  %v681 = vsel %vm593, 0, %v679
  %v682 = vcosq.f32.pop %v680
  %v683 = vsinq.f32.pop %v680
  %vm684 = vweird.f32 %v591
  %v685 = vadd.s32 %v681, 3
  %v686 = vand.u32 %v685, 3
  %vm687 = vcmp.lt.s32.totalorder %v686, 2
  %vm688 = vcmp.eq.s32.totalorder %v686, 0
  %v689 = vxor.u32 %v683, 2147483648
  %v690 = vsel %vm688, %v682, %v689
  %vm691 = vcmp.eq.s32.totalorder %v686, 2
  %v692 = vxor.u32 %v682, 2147483648
  %v693 = vsel %vm691, %v692, %v683
  %v694 = vsel %vm687, %v690, %v693
  %v695 = vsel %vm684, nan, %v694
  %v696 = vand.u32 2147483647, %v591
  %vm697 = vcmp.le.f32.partialorder %v696, 0.7853982
  %vm698 = vcmp.lt.s32.totalorder %v591, 0
  %v699 = vand.u32 %v591, 2139095040
  %v700 = vshrl.u32 %v699, 23
  %v701 = vsub.s32 %v700, 127
  %v702 = vand.u32 2147483647, %v591
  %v703 = vand.u32 %v702, 8388607
  %v704 = vor.u32 %v703, 8388608
  %v705 = vsub.s32 0, %v704
  %v706 = vadd.s32 %v701, 1
  %vm707 = vcmp.gt.s32.totalorder %v706, 0
  %v708 = vsel %vm707, %v706, 0
  %v709 = vshrl.u32 %v708, 5
  %v710 = vand.u32 %v708, 31
  %v711 = vsub.s32 32, %v710
  %v712 = vshrl.u32 683565275, %v711
  %v713 = vshll.u32 683565275, %v710
  %v714 = vshrl.u32 2475754826, %v711
  %v715 = vor.u32 %v713, %v714
  %v716 = vshll.u32 2475754826, %v710
  %v717 = vshrl.u32 2131351028, %v711
  %v718 = vor.u32 %v716, %v717
  %v719 = vshll.u32 2131351028, %v710
  %v720 = vshrl.u32 2102212464, %v711
  %v721 = vor.u32 %v719, %v720
  %v722 = vshll.u32 2102212464, %v710
  %v723 = vshrl.u32 920167782, %v711
  %v724 = vor.u32 %v722, %v723
  %v725 = vshll.u32 920167782, %v710
  %v726 = vshrl.u32 1326507024, %v711
  %v727 = vor.u32 %v725, %v726
  %vm728 = vcmp.lt.s32.totalorder %v709, 1
  %vm729 = vcmp.lt.s32.totalorder %v709, 2
  %vm730 = vcmp.lt.s32.totalorder %v709, 3
  %vm731 = vcmp.lt.s32.totalorder %v709, 4
  %v732 = vsel %vm728, %v712, %v715
  %v733 = vsel %vm731, %v721, 2102212464
  %v734 = vsel %vm730, %v718, %v733
  %v735 = vsel %vm729, %v732, %v734
  %v736 = vsel %vm728, %v715, %v718
  %v737 = vsel %vm731, %v724, 920167782
  %v738 = vsel %vm730, %v721, %v737
  %v739 = vsel %vm729, %v736, %v738
  %v740 = vsel %vm728, %v718, %v721
  %v741 = vsel %vm731, %v727, 1326507024
  %v742 = vsel %vm730, %v724, %v741
  %v743 = vsel %vm729, %v740, %v742
  %v744 = vshll.u32 %v704, 8
  %v745 = vmul.u32.u64.compose %v744, %v743
  %v746 = vextract.low.u32 %v745
  %v747 = vextract.high.u32 %v745
  %v748 = vmul.u32.u64.compose %v744, %v739
  %v749 = vextract.low.u32 %v748
  %v750 = vextract.high.u32 %v748
  %v751 = vmul.u32 %v744, %v735
  %v752 = vadd.s32 %v747, %v749
  %vm753 = vc.u32 %v747, %v749
  %v754 = vadd.s32 %v750, 1
  %v755 = vsel %vm753, %v754, %v750
  %v756 = vadd.s32 %v751, %v755
  %v757 = vadd.s32 %v756, 536870912
  %v758 = vshrl.u32 %v757, 30
  %v759 = vshll.u32 %v758, 30
  %v760 = vsub.s32 %v756, %v759
  %vm761 = vcmp.lt.s32.totalorder %v760, 0
  %v762 = vsub.s32 0, %v760
  %v763 = vsel %vm761, %v762, %v760
  %v764 = vclz %v763
  %v765 = vsub.s32 %v764, 2
  %vm766 = vcmp.gt.s32.totalorder 0, %v765
  %v767 = vsel %vm766, 0, %v765
  %v768 = vsub.s32 32, %v767
  %v769 = vshll.u32 %v760, %v767
  %v770 = vshrl.u32 %v752, %v768
  %v771 = vor.u32 %v769, %v770
  %v772 = vsub.s32 4294967266, %v767
  %v773 = vadd.s32 %v772, 127
  %v774 = vshll.u32 %v773, 23
  %v775 = vor.u32 4788187, %v774
  %v776 = vand.u32 2147483647, %v775
  %v778 = vcvt.s32.f32 %v771
  %v779 = vmul.f32 %v778, %v776
  %v780 = vxor.u32 %v779, 2147483648
  %v781 = vsel %vm698, %v780, %v779
  %v782 = vsub.s32 4, %v758
  %v783 = vsel %vm698, %v782, %v758
  %v784 = vsel %vm697, %v591, %v781
  %v785 = vsel %vm697, 0, %v783
  %v786 = vcosq.f32.pop %v784
  %v787 = vsinq.f32.pop %v784
  %vm788 = vweird.f32 %v591
  %v789 = vand.u32 %v785, 3
  %vm790 = vcmp.lt.s32.totalorder %v789, 2
  %vm791 = vcmp.eq.s32.totalorder %v789, 0
  %v792 = vxor.u32 %v787, 2147483648
  %v793 = vsel %vm791, %v786, %v792
  %vm794 = vcmp.eq.s32.totalorder %v789, 2
  %v795 = vxor.u32 %v786, 2147483648
  %v796 = vsel %vm794, %v795, %v787
  %v797 = vsel %vm790, %v793, %v796
  %v798 = vsel %vm788, nan, %v797
  %v799 = vrcp.pop %v798
  %v800 = vmul.f32 %v695, %v799
  %801 = vst [vmem:[%s6] sm:$0x1] %v800
  // Predicated region
  $region26: #{net_forward.1} parent=0 // pred_check
    _
  $region27: #{net_forward.1} parent=0 // pred_check_branch
    %803 = sbr.rel (0) target = $region29
  $region28: #{net_forward.1} parent=0 // pred_region
    _
  $region29: #{net_forward.1} parent=0 // pred_fallthru
    _
  // Predicated region
  $region30: #{net_forward.1} parent=0 // pred_check
    _
  $region31: #{net_forward.1} parent=0 // pred_check_branch
    %805 = sbr.rel (0) target = $region33
  $region32: #{net_forward.1} parent=0 // pred_region
    _
  $region33: #{net_forward.1} parent=0 // pred_fallthru
    _

</llo_original>
